<compile_context>
chip_gen: v7x
topology: tpu7x:2x2x1
jax: 0.10.0
libtpu: 0.0.40
codegen_flags: <defaults>
</compile_context>

<pallas_src>
import jax
import jax.numpy as jnp
from jax.experimental import pallas as pl
from jax.experimental.pallas import tpu as pltpu

_LANES = 128
_MAX_LANE_WIDTH = 2048                 # widest lane-dense slab presented to the kernel
_SMALL_TOTAL = 64 * 1024               # below this many elements, XLA wins outright
_MIN_MULTISTEP_BYTES = 512 * 1024      # above this per-array, force a multi-step grid


def _addsub_kernel(x_ref, h_ref, add_ref, sub_ref):
    x = x_ref[...]
    h = h_ref[...]
    add_ref[...] = x + h
    sub_ref[...] = x - h


_GEN_DEFAULTS = None


def _generation_defaults():
    """(tile_bytes_per_buffer, vmem_limit_bytes) chosen per TPU generation."""
    global _GEN_DEFAULTS
    if _GEN_DEFAULTS is None:
        vmem_cap = 128 * 1024 * 1024
        try:
            info = pltpu.get_tpu_info()
            vmem_cap = int(getattr(info, "vmem_capacity_bytes", vmem_cap))
        except Exception:
            pass
        if vmem_cap <= 64 * 1024 * 1024:
            # v7x: 64 MiB physical VMEM, very fast HBM -> bigger tiles so the
            # ~0.35us fixed per-step overhead stays <~5%; 8 x 4 MiB live
            # buffers + scratch comfortably inside a 40 MiB scoped limit.
            _GEN_DEFAULTS = (4 * 1024 * 1024, 40 * 1024 * 1024)
        else:
            # v5e/v6e: 128 MiB physical VMEM; 2 MiB tiles are near-optimal.
            # Raise the scoped limit explicitly (v5e's default is only 16 MiB,
            # exactly the 8 x 2 MiB double-buffered working set) so Mosaic
            # internal scratch never forces buffer shrinkage.
            _GEN_DEFAULTS = (2 * 1024 * 1024, 48 * 1024 * 1024)
    return _GEN_DEFAULTS


def _choose_layout(total, itemsize, tile_bytes):
    """Pick (lane_width, row_tile) for a flat array of `total` elems (total % 128 == 0)."""
    sub = max(8, 32 // itemsize)       # sublane multiple: 8 f32, 16 bf16, 32 int8

    # Lane width: widest power-of-two multiple of 128 (<= cap) dividing `total`,
    # while keeping enough rows (>= 8*sub) that a multi-step grid is possible.
    w = _LANES
    while (w * 2 <= _MAX_LANE_WIDTH and total % (w * 2) == 0
           and total // (w * 2) >= 8 * sub):
        w *= 2
    rows = total // w

    # Row-tile target: ~tile_bytes per tile buffer, a multiple of `sub`.
    tm_target = max(sub, (tile_bytes // (w * itemsize)) // sub * sub)

    # Anything bigger than ~512 KiB gets ~8 grid steps so DMA-in, compute and
    # writeback overlap (and v7x's second TensorCore actually gets work).
    if total * itemsize > _MIN_MULTISTEP_BYTES:
        tm_target = min(tm_target, max(sub, (rows // 8) // sub * sub))

    if rows <= tm_target:
        return w, rows                 # single full-extent block; pipelining irrelevant

    # Prefer a tile that divides rows exactly with an even number of grid steps
    # (balanced across v7x's two TCs); then any exact divisor; otherwise fall
    # back to a cdiv grid whose partial last block Pallas masks (no padding).
    for need_even in (True, False):
        t = tm_target
        while t >= sub:
            if rows % t == 0 and (not need_even or (rows // t) % 2 == 0):
                return w, t
            t -= sub
    return w, tm_target


def _addsub_flat(xf, hf):
    """xf, hf flat with size % 128 == 0. Returns flat (x + h, x - h)."""
    total = xf.size
    itemsize = jnp.dtype(xf.dtype).itemsize
    tile_bytes, vmem_limit = _generation_defaults()
    w, tm = _choose_layout(total, itemsize, tile_bytes)
    rows = total // w

    x2 = xf.reshape(rows, w)           # contiguous reshape: free, no HBM copy
    h2 = hf.reshape(rows, w)

    spec = pl.BlockSpec((tm, w), lambda i: (i, 0))
    cost = pl.CostEstimate(flops=2 * total, transcendentals=0,
                           bytes_accessed=4 * total * itemsize)

    add2, sub2 = pl.pallas_call(
        _addsub_kernel,
        grid=(pl.cdiv(rows, tm),),
        in_specs=[spec, spec],
        out_specs=[spec, spec],
        out_shape=(
            jax.ShapeDtypeStruct((rows, w), xf.dtype),
            jax.ShapeDtypeStruct((rows, w), xf.dtype),
        ),
        compiler_params=pltpu.CompilerParams(
            dimension_semantics=("parallel",),   # independent tiles -> v7x 2-TC sharding
            vmem_limit_bytes=vmem_limit,
        ),
        cost_estimate=cost,
    )(x2, h2)
    return add2.reshape(-1), sub2.reshape(-1)


def basic_module_forward(x, h, *, min_pallas_elems=_SMALL_TOTAL):
    """Pallas equivalent of BasicModule.forward: returns (x + h, x - h)."""
    assert x.shape == h.shape and x.dtype == h.dtype
    orig_shape = x.shape
    total = x.size

    # Small-input fast path: launch overhead dominates; let XLA fuse both ops.
    if total < max(min_pallas_elems, _LANES):
        return x + h, x - h

    rem = total % _LANES
    if rem == 0:
        add_f, sub_f = _addsub_flat(x.reshape(-1), h.reshape(-1))
        return add_f.reshape(orig_shape), sub_f.reshape(orig_shape)

    # Ragged total: kernel processes the 128-aligned prefix; the <128-element
    # tail goes through plain XLA. No padded copies of inputs or outputs.
    xf = x.reshape(-1)
    hf = h.reshape(-1)
    main = total - rem
    add_main, sub_main = _addsub_flat(xf[:main], hf[:main])
    x_tail, h_tail = xf[main:], hf[main:]
    add_out = jnp.concatenate([add_main, x_tail + h_tail]).reshape(orig_shape)
    sub_out = jnp.concatenate([sub_main, x_tail - h_tail]).reshape(orig_shape)
    return add_out, sub_out


if __name__ == "__main__":
    key = jax.random.PRNGKey(0)
    kx, kh = jax.random.split(key)

    # BasicModule-sized NCHW input (batch=2, channels=4, spatial 16x16).
    x = jax.random.normal(kx, (2, 4, 16, 16), dtype=jnp.float32)
    h = jax.random.normal(kh, (2, 4, 16, 16), dtype=jnp.float32)

    # Default path: small-input fast path (fused XLA add/sub).
    add_out, sub_out = basic_module_forward(x, h)
    jax.block_until_ready(add_out)
    jax.block_until_ready(sub_out)
    assert jnp.allclose(add_out, x + h), "accum mismatch (fast path)"
    assert jnp.allclose(sub_out, x - h), "sub_accum mismatch (fast path)"

    # Force the Pallas kernel at the module's small shape as well.
    add_k, sub_k = basic_module_forward(x, h, min_pallas_elems=0)
    jax.block_until_ready(add_k)
    jax.block_until_ready(sub_k)
    assert jnp.allclose(add_k, x + h), "accum mismatch (pallas, small)"
    assert jnp.allclose(sub_k, x - h), "sub_accum mismatch (pallas, small)"

    # Larger input: exercises the multi-step, pipelined, even-length grid path.
    x2 = jax.random.normal(kx, (4, 16, 128, 128), dtype=jnp.float32)
    h2 = jax.random.normal(kh, (4, 16, 128, 128), dtype=jnp.float32)
    add2, sub2 = basic_module_forward(x2, h2)
    jax.block_until_ready(add2)
    jax.block_until_ready(sub2)
    assert jnp.allclose(add2, x2 + h2), "accum mismatch (tiled)"
    assert jnp.allclose(sub2, x2 - h2), "sub_accum mismatch (tiled)"

    # Ragged total (not a multiple of 128): kernel prefix + XLA tail.
    x3 = jax.random.normal(kx, (3, 7, 37, 41), dtype=jnp.float32)
    h3 = jax.random.normal(kh, (3, 7, 37, 41), dtype=jnp.float32)
    add3, sub3 = basic_module_forward(x3, h3, min_pallas_elems=0)
    jax.block_until_ready(add3)
    jax.block_until_ready(sub3)
    assert jnp.allclose(add3, x3 + h3), "accum mismatch (ragged)"
    assert jnp.allclose(sub3, x3 - h3), "sub_accum mismatch (ragged)"

    print("KERNEL_OK")
</pallas_src>

<mosaic_0001>
module attributes {stable_mosaic.version = 11 : i64} {
  func.func @_addsub_kernel(%arg0: i32, %arg1: memref<16x128xf32, #tpu.memory_space<vmem>>, %arg2: memref<16x128xf32, #tpu.memory_space<vmem>>, %arg3: memref<16x128xf32, #tpu.memory_space<vmem>>, %arg4: memref<16x128xf32, #tpu.memory_space<vmem>>) attributes {dimension_semantics = [#tpu.dimension_semantics<parallel>], iteration_bounds = array<i64: 1>, scalar_prefetch = 0 : i64, scratch_operands = 0 : i64, tpu.core_type = #tpu.core_type<tc>, window_params = [{transform_indices = @transform_0, window_bounds = array<i64: 16, 128>}, {transform_indices = @transform_1, window_bounds = array<i64: 16, 128>}, {transform_indices = @transform_2, window_bounds = array<i64: 16, 128>}, {transform_indices = @transform_3, window_bounds = array<i64: 16, 128>}]} {
    %c0 = arith.constant 0 : index
    %c0_0 = arith.constant 0 : index
    %0 = vector.load %arg1[%c0, %c0_0] : memref<16x128xf32, #tpu.memory_space<vmem>>, vector<16x128xf32>
    %c0_1 = arith.constant 0 : index
    %c0_2 = arith.constant 0 : index
    %1 = vector.load %arg2[%c0_1, %c0_2] : memref<16x128xf32, #tpu.memory_space<vmem>>, vector<16x128xf32>
    %2 = arith.addf %0, %1 : vector<16x128xf32>
    %c0_3 = arith.constant 0 : index
    %c0_4 = arith.constant 0 : index
    %3 = vector.load %arg3[%c0_3, %c0_4] : memref<16x128xf32, #tpu.memory_space<vmem>>, vector<16x128xf32>
    tpu.vector_store %arg3[%c0_3, %c0_4], %2 {strides = array<i32>} : memref<16x128xf32, #tpu.memory_space<vmem>>, vector<16x128xf32>,
    %4 = arith.subf %0, %1 : vector<16x128xf32>
    %c0_5 = arith.constant 0 : index
    %c0_6 = arith.constant 0 : index
    %5 = vector.load %arg4[%c0_5, %c0_6] : memref<16x128xf32, #tpu.memory_space<vmem>>, vector<16x128xf32>
    tpu.vector_store %arg4[%c0_5, %c0_6], %4 {strides = array<i32>} : memref<16x128xf32, #tpu.memory_space<vmem>>, vector<16x128xf32>,
    return
  }
  func.func @transform_0(%arg0: i32) -> (i32, i32) {
    %c0_i32 = arith.constant 0 : i32
    %c0_i32_0 = arith.constant 0 : i32
    return %arg0, %c0_i32 : i32, i32
  }
  func.func @transform_1(%arg0: i32) -> (i32, i32) {
    %c0_i32 = arith.constant 0 : i32
    %c0_i32_0 = arith.constant 0 : i32
    return %arg0, %c0_i32 : i32, i32
  }
  func.func @transform_2(%arg0: i32) -> (i32, i32) {
    %c0_i32 = arith.constant 0 : i32
    %c0_i32_0 = arith.constant 0 : i32
    return %arg0, %c0_i32 : i32, i32
  }
  func.func @transform_3(%arg0: i32) -> (i32, i32) {
    %c0_i32 = arith.constant 0 : i32
    %c0_i32_0 = arith.constant 0 : i32
    return %arg0, %c0_i32 : i32, i32
  }
}

</mosaic_0001>

<llo_original>
// kernel: tpu_custom_call.1
$region0: #{tpu_custom_call.1}
  #allocation0 [shape = 'u32[]', space=smem, size = 0x4, offset = 0x4, fixed_abs, tag = 'smem constant byte address 0x4 - core index']
  #allocation1 [shape = 'u32[144,128]{1,0:T(1,128)}', space=vmem, size = 0x12000, scoped, tag = 'internal scratch']
  %s0 = inlined_call_operand.hbm [shape: f32[16,128], index: 0, kind: input, shape index: {}]
  %s1 = inlined_call_operand.hbm [shape: f32[16,128], index: 1, kind: input, shape index: {}]
  %s2 = inlined_call_operand.hbm [shape: f32[16,128], index: 2, kind: output, shape index: {0}]
  %s3 = inlined_call_operand.hbm [shape: f32[16,128], index: 3, kind: output, shape index: {1}]
  %4 = xla_tuple %s2, %s3
  %s5 = sld [smem:[#allocation0]]
  $region34: #{tpu_custom_call.1} parent=0
    _
  %s7 = ssub.s32 1, %s5
  %s8 = scalar_select 0, %s7, %s5
  $region1: #{tpu_custom_call.1} parent=0
    #allocation2 [shape = 'u8[8192]{0}', space=vmem, size = 0x2000, scoped, tag = 'input window, operand 0, single buffered']
    #allocation3 [shape = 's32[1]{0}', space=sflag, size = 0x4, scoped, tag = 'scoped memory for tpu_custom_call.1']
    #allocation4 [shape = 's32[1]{0}', space=sflag, size = 0x4, scoped, tag = 'scoped memory for tpu_custom_call.1']
    #allocation5 [shape = 'u8[8192]{0}', space=vmem, size = 0x2000, scoped, tag = 'input window, operand 1, single buffered']
    #allocation6 [shape = 's32[1]{0}', space=sflag, size = 0x4, scoped, tag = 'scoped memory for tpu_custom_call.1']
    #allocation7 [shape = 'u8[8192]{0}', space=vmem, size = 0x2000, scoped, tag = 'output window, operand 0, single buffered']
    #allocation8 [shape = 'u8[8192]{0}', space=vmem, size = 0x2000, scoped, tag = 'output window, operand 1, single buffered']
    #allocation9 [shape = 's32[1]{0}', space=sflag, size = 0x4, scoped, tag = 'scoped memory for tpu_custom_call.1']
    %9 = vsyncpa [#allocation3], 0
    %10 = vsyncpa [#allocation6], 0
    %11 = vsyncpa [#allocation4], 0
    %12 = vsyncpa [#allocation9], 0
    // Predicated region
    $region2: #{tpu_custom_call.1} parent=1 // pred_check
      _
    $region3: #{tpu_custom_call.1} parent=1 // pred_check_branch
      %14 = sbr.rel (0) target = $region5
    $region4: #{tpu_custom_call.1} parent=1 // pred_region
      %s16 = ssub.s32 256, 256
      %17 = vsyncadd [#allocation3], %s16
      %s18 = sshll.u32 [#allocation2], 4
      %s19 = int_to_ptr.vmem [resolvable:$true] %s18
      %24 = dma.hbm_to_vmem [thread:$0]  %s0, 256, %s19, [#allocation3], 128, 128, 8
    $region5: #{tpu_custom_call.1} parent=1 // pred_fallthru
      _
    // Predicated region
    $region6: #{tpu_custom_call.1} parent=1 // pred_check
      _
    $region7: #{tpu_custom_call.1} parent=1 // pred_check_branch
      %26 = sbr.rel (0) target = $region9
    $region8: #{tpu_custom_call.1} parent=1 // pred_region
      %s28 = ssub.s32 256, 256
      %29 = vsyncadd [#allocation6], %s28
      %s30 = sshll.u32 [#allocation5], 4
      %s31 = int_to_ptr.vmem [resolvable:$true] %s30
      %36 = dma.hbm_to_vmem [thread:$0]  %s1, 256, %s31, [#allocation6], 128, 128, 8
    $region9: #{tpu_custom_call.1} parent=1 // pred_fallthru
      _
    // Predicated region
    $region10: #{tpu_custom_call.1} parent=1 // pred_check
      _
    $region11: #{tpu_custom_call.1} parent=1 // pred_check_branch
      %38 = sbr.rel (0) target = $region13
    $region12: #{tpu_custom_call.1} parent=1 // pred_region
      %39 = dma.done [#allocation3], 256
    $region13: #{tpu_custom_call.1} parent=1 // pred_fallthru
      _
    // Predicated region
    $region14: #{tpu_custom_call.1} parent=1 // pred_check
      _
    $region15: #{tpu_custom_call.1} parent=1 // pred_check_branch
      %41 = sbr.rel (0) target = $region17
    $region16: #{tpu_custom_call.1} parent=1 // pred_region
      %42 = dma.done [#allocation6], 256
    $region17: #{tpu_custom_call.1} parent=1 // pred_fallthru
      _
    %v43 = vld [vmem:[#allocation2] sm:$0xff]
    %v44 = vld [vmem:[#allocation2 + $0x8] sm:$0xff]
    %v45 = vld [vmem:[#allocation5] sm:$0xff]
    %v46 = vld [vmem:[#allocation5 + $0x8] sm:$0xff]
    %v47 = vadd.f32 %v43, %v45
    %v48 = vadd.f32 %v44, %v46
    %49 = vst [vmem:[#allocation7] sm:$0xff] %v47
    %50 = vst [vmem:[#allocation7 + $0x8] sm:$0xff] %v48
    %v51 = vsub.f32 %v43, %v45
    %v52 = vsub.f32 %v44, %v46
    %53 = vst [vmem:[#allocation8] sm:$0xff] %v51
    %54 = vst [vmem:[#allocation8 + $0x8] sm:$0xff] %v52
    // Predicated region
    $region18: #{tpu_custom_call.1} parent=1 // pred_check
      _
    $region19: #{tpu_custom_call.1} parent=1 // pred_check_branch
      %56 = sbr.rel (0) target = $region21
    $region20: #{tpu_custom_call.1} parent=1 // pred_region
      %s58 = ssub.s32 256, 256
      %59 = vsyncadd [#allocation4], %s58
      %s60 = sshll.u32 [#allocation7], 4
      %s61 = int_to_ptr.vmem [resolvable:$true] %s60
      %66 = dma.vmem_to_hbm [thread:$0]  %s61, 256, %s2, [#allocation4], 128, 128, 8
    $region21: #{tpu_custom_call.1} parent=1 // pred_fallthru
      _
    // Predicated region
    $region22: #{tpu_custom_call.1} parent=1 // pred_check
      _
    $region23: #{tpu_custom_call.1} parent=1 // pred_check_branch
      %68 = sbr.rel (0) target = $region25
    $region24: #{tpu_custom_call.1} parent=1 // pred_region
      %s70 = ssub.s32 256, 256
      %71 = vsyncadd [#allocation9], %s70
      %s72 = sshll.u32 [#allocation8], 4
      %s73 = int_to_ptr.vmem [resolvable:$true] %s72
      %78 = dma.vmem_to_hbm [thread:$0]  %s73, 256, %s3, [#allocation9], 128, 128, 8
    $region25: #{tpu_custom_call.1} parent=1 // pred_fallthru
      _
    // Predicated region
    $region26: #{tpu_custom_call.1} parent=1 // pred_check
      _
    $region27: #{tpu_custom_call.1} parent=1 // pred_check_branch
      %80 = sbr.rel (0) target = $region29
    $region28: #{tpu_custom_call.1} parent=1 // pred_region
      %81 = dma.done [#allocation4], 256
    $region29: #{tpu_custom_call.1} parent=1 // pred_fallthru
      _
    // Predicated region
    $region30: #{tpu_custom_call.1} parent=1 // pred_check
      _
    $region31: #{tpu_custom_call.1} parent=1 // pred_check_branch
      %83 = sbr.rel (0) target = $region33
    $region32: #{tpu_custom_call.1} parent=1 // pred_region
      %84 = dma.done [#allocation9], 256
    $region33: #{tpu_custom_call.1} parent=1 // pred_fallthru
      _
    %85 = vsyncpa [#allocation3], 1
    %86 = vsyncpa [#allocation6], 1
    %87 = vsyncpa [#allocation4], 1
    %88 = vsyncpa [#allocation9], 1

</llo_original>
